<compile_context>
chip_gen: v6e
topology: v6e:2x2x1
jax: 0.10.0
libtpu: 0.0.40
codegen_flags: <defaults>
</compile_context>

<pallas_src>
import functools

import jax
import jax.numpy as jnp
from jax.experimental import pallas as pl
from jax.experimental.pallas import tpu as pltpu

BN_EPS = 1e-5
NEG_SLOPE = 0.01
LANE = 128
SUBLANE = 8


def _round_up(n, m):
    return ((n + m - 1) // m) * m


def ann_kernel(x_ref,
               w1_ref, b1_ref,
               w2_ref, b2_ref,
               w3_ref, b3_ref,
               w4_ref, b4_ref,
               o_ref, *, precision=None):
    """One batch tile: 4 matmuls + bias + LeakyReLU (BN already folded)."""

    def layer(h, w_ref, b_ref, activate):
        # MXU matmul; inputs cast to the weight dtype (bf16 by default),
        # accumulate in f32. The cast hides under the MXU.
        z = jnp.dot(h.astype(w_ref.dtype), w_ref[...],
                    preferred_element_type=jnp.float32,
                    precision=precision)
        z = z + b_ref[...]                       # (1, H) f32 bias broadcasts
        if activate:
            z = jnp.maximum(z, NEG_SLOPE * z)    # LeakyReLU(0.01): mul + max
        return z

    h = layer(x_ref[...], w1_ref, b1_ref, True)   # fc1 + bn1 + lrelu (+ dropout1: id)
    h = layer(h, w2_ref, b2_ref, True)            # fc2 + bn2 + lrelu (+ dropout2: id)
    h = layer(h, w3_ref, b3_ref, True)            # fc3 + bn3 + lrelu (+ dropout3: id)
    out = layer(h, w4_ref, b4_ref, False)         # fc4
    o_ref[...] = out.astype(o_ref.dtype)


def _fold_bn(w, b, bn, eps=BN_EPS):
    """Fold eval-mode BatchNorm1d (running stats) into the preceding Linear."""
    gamma, beta, mean, var = bn[0], bn[1], bn[2], bn[3]
    scale = gamma * jax.lax.rsqrt(var + eps)          # (H,)
    w_f = w * scale[None, :]                          # scale each output column
    b_f = (b.reshape(-1) - mean) * scale + beta       # (H,)
    return w_f, b_f.reshape(1, -1)


def _pad2(a, rows, cols):
    if a.shape == (rows, cols):
        return a
    return jnp.pad(a, ((0, rows - a.shape[0]), (0, cols - a.shape[1])))


@functools.partial(
    jax.jit,
    static_argnames=("tile_batch", "param_dtype", "out_dtype", "precision"))
def ann_forward(x, params, *, tile_batch=512, param_dtype=jnp.bfloat16,
                out_dtype=jnp.float32, precision=None):
    """Fused ANN forward.  x: (batch, input_size) f32.

    params: w1..w4 as (in, out) [transpose of nn.Linear.weight], b1..b4 as
    (1, out), bn1..bn3 packed (4, H) = [gamma, beta, running_mean, running_var].
    """
    batch, in_size = x.shape
    hidden = params["w1"].shape[1]
    out_size = params["w4"].shape[1]

    # ---- fold BN into linears (eval mode) --------------------------------
    w1, b1 = _fold_bn(params["w1"], params["b1"], params["bn1"])
    w2, b2 = _fold_bn(params["w2"], params["b2"], params["bn2"])
    w3, b3 = _fold_bn(params["w3"], params["b3"], params["bn3"])
    w4, b4 = params["w4"], params["b4"].reshape(1, -1)

    # ---- pad params to lane-dense shapes (zero pad is exact no-op) -------
    in_p = _round_up(in_size, LANE)
    h_p = _round_up(hidden, LANE)
    out_p = _round_up(out_size, LANE)

    w1p = _pad2(w1, in_p, h_p).astype(param_dtype)
    w2p = _pad2(w2, h_p, h_p).astype(param_dtype)
    w3p = _pad2(w3, h_p, h_p).astype(param_dtype)
    w4p = _pad2(w4, h_p, out_p).astype(param_dtype)
    b1p = _pad2(b1, 1, h_p).astype(jnp.float32)
    b2p = _pad2(b2, 1, h_p).astype(jnp.float32)
    b3p = _pad2(b3, 1, h_p).astype(jnp.float32)
    b4p = _pad2(b4, 1, out_p).astype(jnp.float32)

    # ---- batch tiling: >=2 grid steps when batch allows (v7x megacore) ---
    batch8 = _round_up(batch, SUBLANE)
    tb = min(tile_batch, batch8)
    if batch8 >= 2 * SUBLANE:
        tb = min(tb, _round_up((batch8 + 1) // 2, SUBLANE))
    tb = _round_up(tb, SUBLANE)
    batch_p = _round_up(batch, tb)
    grid = (batch_p // tb,)

    # x stays in its original dtype (f32): no padded/cast HBM copy unless the
    # shapes actually require padding; the kernel casts on the fly.
    need_pad = (batch_p != batch) or (in_p != in_size)
    x_p = _pad2(x, batch_p, in_p) if need_pad else x

    def resident(shape):
        # Constant index_map -> block never changes; single-buffer it.
        return pl.BlockSpec(shape, lambda i: (0, 0),
                            pipeline_mode=pl.Buffered(buffer_count=1))

    args = (x_p, w1p, b1p, w2p, b2p, w3p, b3p, w4p, b4p)
    in_specs = [pl.BlockSpec((tb, in_p), lambda i: (i, 0)),
                resident(w1p.shape), resident(b1p.shape),
                resident(w2p.shape), resident(b2p.shape),
                resident(w3p.shape), resident(b3p.shape),
                resident(w4p.shape), resident(b4p.shape)]
    out_specs = pl.BlockSpec((tb, out_p), lambda i: (i, 0))

    # ---- VMEM budget from the actual buffer plan --------------------------
    w_item = jnp.dtype(param_dtype).itemsize
    o_item = jnp.dtype(out_dtype).itemsize
    x_item = jnp.dtype(x.dtype).itemsize
    weight_bytes = (in_p * h_p + 2 * h_p * h_p + h_p * out_p) * w_item
    bias_bytes = (3 * h_p + out_p) * 4
    x_tile_bytes = 2 * tb * in_p * x_item           # double-buffered input tile
    o_tile_bytes = 2 * tb * out_p * o_item          # double-buffered output tile
    act_bytes = tb * (2 * h_p * 4 + max(in_p, h_p) * w_item)  # live f32 acts + casts
    vmem_est = weight_bytes + bias_bytes + x_tile_bytes + o_tile_bytes + act_bytes
    # 2x headroom for compiler scratch; floor at 32 MiB, cap below physical.
    vmem_limit = int(min(max(2 * vmem_est, 32 << 20), 96 << 20))

    flops = 2 * batch_p * (in_p * h_p + 2 * h_p * h_p + h_p * out_p)
    bytes_accessed = (weight_bytes + bias_bytes
                      + batch_p * in_p * x_item + batch_p * out_p * o_item)

    out_padded = pl.pallas_call(
        functools.partial(ann_kernel, precision=precision),
        out_shape=jax.ShapeDtypeStruct((batch_p, out_p), out_dtype),
        grid=grid,
        in_specs=in_specs,
        out_specs=out_specs,
        compiler_params=pltpu.CompilerParams(
            dimension_semantics=("parallel",),
            vmem_limit_bytes=vmem_limit),
        cost_estimate=pl.CostEstimate(flops=flops,
                                      transcendentals=0,
                                      bytes_accessed=bytes_accessed),
    )(*args)

    return out_padded[:batch, :out_size]


# --------------------------------------------------------------------------
# Deterministic synthetic parameters + pure-JAX reference (un-fused BN path).
# --------------------------------------------------------------------------
def make_params(key, input_size, hidden_size, output_size):
    ks = jax.random.split(key, 14)

    def linear(kw, kb, fan_in, fan_out):
        bound = 1.0 / jnp.sqrt(fan_in)
        w = jax.random.uniform(kw, (fan_in, fan_out), jnp.float32, -bound, bound)
        b = jax.random.uniform(kb, (1, fan_out), jnp.float32, -bound, bound)
        return w, b

    def bn(kg, kb, h):
        gamma = 1.0 + 0.1 * jax.random.normal(kg, (h,), jnp.float32)
        beta = 0.1 * jax.random.normal(kb, (h,), jnp.float32)
        mean = 0.05 * jax.random.normal(jax.random.fold_in(kg, 7), (h,), jnp.float32)
        var = 1.0 + 0.1 * jax.random.uniform(jax.random.fold_in(kb, 7), (h,), jnp.float32)
        return jnp.stack([gamma, beta, mean, var], axis=0)  # (4, H)

    w1, b1 = linear(ks[0], ks[1], input_size, hidden_size)
    w2, b2 = linear(ks[2], ks[3], hidden_size, hidden_size)
    w3, b3 = linear(ks[4], ks[5], hidden_size, hidden_size)
    w4, b4 = linear(ks[6], ks[7], hidden_size, output_size)
    bn1 = bn(ks[8], ks[9], hidden_size)
    bn2 = bn(ks[10], ks[11], hidden_size)
    bn3 = bn(ks[12], ks[13], hidden_size)

    return dict(w1=w1, b1=b1, bn1=bn1,
                w2=w2, b2=b2, bn2=bn2,
                w3=w3, b3=b3, bn3=bn3,
                w4=w4, b4=b4)


def ann_reference(x, p):
    def block(h, w, b, bn):
        z = h @ w + b
        gamma, beta, mean, var = bn[0], bn[1], bn[2], bn[3]
        z = (z - mean) / jnp.sqrt(var + BN_EPS) * gamma + beta
        return jnp.where(z > 0, z, NEG_SLOPE * z)

    h = block(x, p["w1"], p["b1"], p["bn1"])
    h = block(h, p["w2"], p["b2"], p["bn2"])
    h = block(h, p["w3"], p["b3"], p["bn3"])
    return h @ p["w4"] + p["b4"]


if __name__ == "__main__":
    batch, input_size, hidden_size, output_size = 8, 32, 32, 16

    key = jax.random.PRNGKey(0)
    kx, kp = jax.random.split(key)
    x = jax.random.normal(kx, (batch, input_size), jnp.float32)
    params = make_params(kp, input_size, hidden_size, output_size)

    ref = ann_reference(x, params)

    # f32-weights path (tight tolerance at these small K sizes)
    out_f32 = jax.block_until_ready(
        ann_forward(x, params, param_dtype=jnp.float32))
    assert out_f32.shape == (batch, output_size)
    assert jnp.allclose(out_f32, ref, atol=1e-4, rtol=1e-4), "f32 mismatch vs reference"

    # default path: bf16 matmul inputs, f32 accumulation/epilogue
    out_bf16 = jax.block_until_ready(ann_forward(x, params))
    assert out_bf16.shape == (batch, output_size)
    assert jnp.allclose(out_bf16, ref, atol=1e-1, rtol=1e-1), "bf16 mismatch vs reference"

    print("KERNEL_OK")
</pallas_src>

<mosaic_0001>
module attributes {stable_mosaic.version = 11 : i64} {
  func.func @ann_kernel(%arg0: i32, %arg1: memref<8x128xf32, #tpu.memory_space<vmem>>, %arg2: memref<128x128xf32, #tpu.memory_space<vmem>>, %arg3: memref<1x128xf32, #tpu.memory_space<vmem>>, %arg4: memref<128x128xf32, #tpu.memory_space<vmem>>, %arg5: memref<1x128xf32, #tpu.memory_space<vmem>>, %arg6: memref<128x128xf32, #tpu.memory_space<vmem>>, %arg7: memref<1x128xf32, #tpu.memory_space<vmem>>, %arg8: memref<128x128xf32, #tpu.memory_space<vmem>>, %arg9: memref<1x128xf32, #tpu.memory_space<vmem>>, %arg10: memref<8x128xf32, #tpu.memory_space<vmem>>) attributes {dimension_semantics = [#tpu.dimension_semantics<parallel>], iteration_bounds = array<i64: 1>, scalar_prefetch = 0 : i64, scratch_operands = 0 : i64, tpu.core_type = #tpu.core_type<tc>, window_params = [{transform_indices = @transform_0, window_bounds = array<i64: 8, 128>}, {pipeline_mode = #tpu.pipeline_mode<synchronous>, transform_indices = @transform_1, window_bounds = array<i64: 128, 128>}, {pipeline_mode = #tpu.pipeline_mode<synchronous>, transform_indices = @transform_2, window_bounds = array<i64: 1, 128>}, {pipeline_mode = #tpu.pipeline_mode<synchronous>, transform_indices = @transform_3, window_bounds = array<i64: 128, 128>}, {pipeline_mode = #tpu.pipeline_mode<synchronous>, transform_indices = @transform_4, window_bounds = array<i64: 1, 128>}, {pipeline_mode = #tpu.pipeline_mode<synchronous>, transform_indices = @transform_5, window_bounds = array<i64: 128, 128>}, {pipeline_mode = #tpu.pipeline_mode<synchronous>, transform_indices = @transform_6, window_bounds = array<i64: 1, 128>}, {pipeline_mode = #tpu.pipeline_mode<synchronous>, transform_indices = @transform_7, window_bounds = array<i64: 128, 128>}, {pipeline_mode = #tpu.pipeline_mode<synchronous>, transform_indices = @transform_8, window_bounds = array<i64: 1, 128>}, {transform_indices = @transform_9, window_bounds = array<i64: 8, 128>}]} {
    %c0 = arith.constant 0 : index
    %c0_0 = arith.constant 0 : index
    %0 = vector.load %arg1[%c0, %c0_0] : memref<8x128xf32, #tpu.memory_space<vmem>>, vector<8x128xf32>
    %c0_1 = arith.constant 0 : index
    %c0_2 = arith.constant 0 : index
    %1 = vector.load %arg2[%c0_1, %c0_2] : memref<128x128xf32, #tpu.memory_space<vmem>>, vector<128x128xf32>
    %cst = arith.constant dense<0.000000e+00> : vector<8x128xf32>
    %2 = tpu.matmul %0, %1, %cst {dimension_numbers = #tpu.dot_dimension_numbers<[1], [0], [0], [1], [0, 0, 1, 1], [], []>} : vector<8x128xf32>, vector<128x128xf32>, vector<8x128xf32> -> vector<8x128xf32>
    %c0_3 = arith.constant 0 : index
    %c0_4 = arith.constant 0 : index
    %3 = vector.load %arg3[%c0_3, %c0_4] : memref<1x128xf32, #tpu.memory_space<vmem>>, vector<1x128xf32>
    %4 = vector.broadcast %3 : vector<1x128xf32> to vector<8x128xf32>
    %5 = arith.addf %2, %4 : vector<8x128xf32>
    %cst_5 = arith.constant 0.00999999977 : f32
    %6 = vector.broadcast %cst_5 : f32 to vector<8x128xf32>
    %7 = arith.mulf %6, %5 : vector<8x128xf32>
    %8 = arith.maximumf %5, %7 : vector<8x128xf32>
    %c0_6 = arith.constant 0 : index
    %c0_7 = arith.constant 0 : index
    %9 = vector.load %arg4[%c0_6, %c0_7] : memref<128x128xf32, #tpu.memory_space<vmem>>, vector<128x128xf32>
    %cst_8 = arith.constant dense<0.000000e+00> : vector<8x128xf32>
    %10 = tpu.matmul %8, %9, %cst_8 {dimension_numbers = #tpu.dot_dimension_numbers<[1], [0], [0], [1], [0, 0, 1, 1], [], []>} : vector<8x128xf32>, vector<128x128xf32>, vector<8x128xf32> -> vector<8x128xf32>
    %c0_9 = arith.constant 0 : index
    %c0_10 = arith.constant 0 : index
    %11 = vector.load %arg5[%c0_9, %c0_10] : memref<1x128xf32, #tpu.memory_space<vmem>>, vector<1x128xf32>
    %12 = vector.broadcast %11 : vector<1x128xf32> to vector<8x128xf32>
    %13 = arith.addf %10, %12 : vector<8x128xf32>
    %cst_11 = arith.constant 0.00999999977 : f32
    %14 = vector.broadcast %cst_11 : f32 to vector<8x128xf32>
    %15 = arith.mulf %14, %13 : vector<8x128xf32>
    %16 = arith.maximumf %13, %15 : vector<8x128xf32>
    %c0_12 = arith.constant 0 : index
    %c0_13 = arith.constant 0 : index
    %17 = vector.load %arg6[%c0_12, %c0_13] : memref<128x128xf32, #tpu.memory_space<vmem>>, vector<128x128xf32>
    %cst_14 = arith.constant dense<0.000000e+00> : vector<8x128xf32>
    %18 = tpu.matmul %16, %17, %cst_14 {dimension_numbers = #tpu.dot_dimension_numbers<[1], [0], [0], [1], [0, 0, 1, 1], [], []>} : vector<8x128xf32>, vector<128x128xf32>, vector<8x128xf32> -> vector<8x128xf32>
    %c0_15 = arith.constant 0 : index
    %c0_16 = arith.constant 0 : index
    %19 = vector.load %arg7[%c0_15, %c0_16] : memref<1x128xf32, #tpu.memory_space<vmem>>, vector<1x128xf32>
    %20 = vector.broadcast %19 : vector<1x128xf32> to vector<8x128xf32>
    %21 = arith.addf %18, %20 : vector<8x128xf32>
    %cst_17 = arith.constant 0.00999999977 : f32
    %22 = vector.broadcast %cst_17 : f32 to vector<8x128xf32>
    %23 = arith.mulf %22, %21 : vector<8x128xf32>
    %24 = arith.maximumf %21, %23 : vector<8x128xf32>
    %c0_18 = arith.constant 0 : index
    %c0_19 = arith.constant 0 : index
    %25 = vector.load %arg8[%c0_18, %c0_19] : memref<128x128xf32, #tpu.memory_space<vmem>>, vector<128x128xf32>
    %cst_20 = arith.constant dense<0.000000e+00> : vector<8x128xf32>
    %26 = tpu.matmul %24, %25, %cst_20 {dimension_numbers = #tpu.dot_dimension_numbers<[1], [0], [0], [1], [0, 0, 1, 1], [], []>} : vector<8x128xf32>, vector<128x128xf32>, vector<8x128xf32> -> vector<8x128xf32>
    %c0_21 = arith.constant 0 : index
    %c0_22 = arith.constant 0 : index
    %27 = vector.load %arg9[%c0_21, %c0_22] : memref<1x128xf32, #tpu.memory_space<vmem>>, vector<1x128xf32>
    %28 = vector.broadcast %27 : vector<1x128xf32> to vector<8x128xf32>
    %29 = arith.addf %26, %28 : vector<8x128xf32>
    %c0_23 = arith.constant 0 : index
    %c0_24 = arith.constant 0 : index
    %30 = vector.load %arg10[%c0_23, %c0_24] : memref<8x128xf32, #tpu.memory_space<vmem>>, vector<8x128xf32>
    tpu.vector_store %arg10[%c0_23, %c0_24], %29 {strides = array<i32>} : memref<8x128xf32, #tpu.memory_space<vmem>>, vector<8x128xf32>,
    return
  }
  func.func @transform_0(%arg0: i32) -> (i32, i32) {
    %c0_i32 = arith.constant 0 : i32
    %c0_i32_0 = arith.constant 0 : i32
    return %arg0, %c0_i32 : i32, i32
  }
  func.func @transform_1(%arg0: i32) -> (i32, i32) {
    %c0_i32 = arith.constant 0 : i32
    %c0_i32_0 = arith.constant 0 : i32
    %c0_i32_1 = arith.constant 0 : i32
    return %c0_i32, %c0_i32_0 : i32, i32
  }
  func.func @transform_2(%arg0: i32) -> (i32, i32) {
    %c0_i32 = arith.constant 0 : i32
    %c0_i32_0 = arith.constant 0 : i32
    %c0_i32_1 = arith.constant 0 : i32
    return %c0_i32, %c0_i32_0 : i32, i32
  }
  func.func @transform_3(%arg0: i32) -> (i32, i32) {
    %c0_i32 = arith.constant 0 : i32
    %c0_i32_0 = arith.constant 0 : i32
    %c0_i32_1 = arith.constant 0 : i32
    return %c0_i32, %c0_i32_0 : i32, i32
  }
  func.func @transform_4(%arg0: i32) -> (i32, i32) {
    %c0_i32 = arith.constant 0 : i32
    %c0_i32_0 = arith.constant 0 : i32
    %c0_i32_1 = arith.constant 0 : i32
    return %c0_i32, %c0_i32_0 : i32, i32
  }
  func.func @transform_5(%arg0: i32) -> (i32, i32) {
    %c0_i32 = arith.constant 0 : i32
    %c0_i32_0 = arith.constant 0 : i32
    %c0_i32_1 = arith.constant 0 : i32
    return %c0_i32, %c0_i32_0 : i32, i32
  }
  func.func @transform_6(%arg0: i32) -> (i32, i32) {
    %c0_i32 = arith.constant 0 : i32
    %c0_i32_0 = arith.constant 0 : i32
    %c0_i32_1 = arith.constant 0 : i32
    return %c0_i32, %c0_i32_0 : i32, i32
  }
  func.func @transform_7(%arg0: i32) -> (i32, i32) {
    %c0_i32 = arith.constant 0 : i32
    %c0_i32_0 = arith.constant 0 : i32
    %c0_i32_1 = arith.constant 0 : i32
    return %c0_i32, %c0_i32_0 : i32, i32
  }
  func.func @transform_8(%arg0: i32) -> (i32, i32) {
    %c0_i32 = arith.constant 0 : i32
    %c0_i32_0 = arith.constant 0 : i32
    %c0_i32_1 = arith.constant 0 : i32
    return %c0_i32, %c0_i32_0 : i32, i32
  }
  func.func @transform_9(%arg0: i32) -> (i32, i32) {
    %c0_i32 = arith.constant 0 : i32
    %c0_i32_0 = arith.constant 0 : i32
    return %arg0, %c0_i32 : i32, i32
  }
}

</mosaic_0001>

<llo_original>
// kernel: ann_forward.1
$region0: #{ann_forward.1}
  #allocation0 [shape = 'u32[]', space=smem, size = 0x4, offset = 0x4, fixed_abs, tag = 'smem constant byte address 0x4 - core index']
  #allocation1 [shape = 'u32[144,128]{1,0:T(1,128)}', space=vmem, size = 0x12000, scoped, tag = 'internal scratch']
  %s0 = inlined_call_operand.vmem [shape: f32[8,128], index: 0, kind: input, shape index: {}]
  %s1 = inlined_call_operand.vmem [shape: f32[128,128], index: 1, kind: input, shape index: {}]
  %s2 = inlined_call_operand.vmem [shape: f32[1,128], index: 2, kind: input, shape index: {}]
  %s3 = inlined_call_operand.vmem [shape: f32[128,128], index: 3, kind: input, shape index: {}]
  %s4 = inlined_call_operand.vmem [shape: f32[1,128], index: 4, kind: input, shape index: {}]
  %s5 = inlined_call_operand.vmem [shape: f32[128,128], index: 5, kind: input, shape index: {}]
  %s6 = inlined_call_operand.vmem [shape: f32[1,128], index: 6, kind: input, shape index: {}]
  %s7 = inlined_call_operand.vmem [shape: f32[128,128], index: 7, kind: input, shape index: {}]
  %s8 = inlined_call_operand.vmem [shape: f32[1,128], index: 8, kind: input, shape index: {}]
  %s9 = inlined_call_operand.hbm [shape: f32[8,128], index: 9, kind: output, shape index: {}]
  %s10 = sld [smem:[#allocation0]]
  $region46: #{ann_forward.1} parent=0
    _
  %s12 = ssub.s32 1, %s10
  %s13 = scalar_select 0, %s12, %s10
  $region1: #{ann_forward.1} parent=0
    #allocation2 [shape = 'u8[4096]{0}', space=vmem, size = 0x1000, scoped, tag = 'output window, operand 0, single buffered']
    #allocation3 [shape = 's32[1]{0}', space=sflag, size = 0x4, scoped, tag = 'scoped memory for ann_forward.1']
    %14 = vsyncpa [#allocation3], 0
    // Predicated region
    $region2: #{ann_forward.1} parent=1 // pred_check
      _
    $region3: #{ann_forward.1} parent=1 // pred_check_branch
      %16 = sbr.rel (0) target = $region5
    $region4: #{ann_forward.1} parent=1 // pred_region
      _
    $region5: #{ann_forward.1} parent=1 // pred_fallthru
      _
    // Predicated region
    $region6: #{ann_forward.1} parent=1 // pred_check
      _
    $region7: #{ann_forward.1} parent=1 // pred_check_branch
      %18 = sbr.rel (0) target = $region9
    $region8: #{ann_forward.1} parent=1 // pred_region
      _
    $region9: #{ann_forward.1} parent=1 // pred_fallthru
      _
    // Predicated region
    $region10: #{ann_forward.1} parent=1 // pred_check
      _
    $region11: #{ann_forward.1} parent=1 // pred_check_branch
      %20 = sbr.rel (0) target = $region13
    $region12: #{ann_forward.1} parent=1 // pred_region
      _
    $region13: #{ann_forward.1} parent=1 // pred_fallthru
      _
    // Predicated region
    $region14: #{ann_forward.1} parent=1 // pred_check
      _
    $region15: #{ann_forward.1} parent=1 // pred_check_branch
      %22 = sbr.rel (0) target = $region17
    $region16: #{ann_forward.1} parent=1 // pred_region
      _
    $region17: #{ann_forward.1} parent=1 // pred_fallthru
      _
    // Predicated region
    $region18: #{ann_forward.1} parent=1 // pred_check
      _
    $region19: #{ann_forward.1} parent=1 // pred_check_branch
      %24 = sbr.rel (0) target = $region21
    $region20: #{ann_forward.1} parent=1 // pred_region
      _
    $region21: #{ann_forward.1} parent=1 // pred_fallthru
      _
    // Predicated region
    $region22: #{ann_forward.1} parent=1 // pred_check
      _
    $region23: #{ann_forward.1} parent=1 // pred_check_branch
      %26 = sbr.rel (0) target = $region25
    $region24: #{ann_forward.1} parent=1 // pred_region
      _
    $region25: #{ann_forward.1} parent=1 // pred_fallthru
      _
    // Predicated region
    $region26: #{ann_forward.1} parent=1 // pred_check
      _
    $region27: #{ann_forward.1} parent=1 // pred_check_branch
      %28 = sbr.rel (0) target = $region29
    $region28: #{ann_forward.1} parent=1 // pred_region
      _
    $region29: #{ann_forward.1} parent=1 // pred_fallthru
      _
    // Predicated region
    $region30: #{ann_forward.1} parent=1 // pred_check
      _
    $region31: #{ann_forward.1} parent=1 // pred_check_branch
      %30 = sbr.rel (0) target = $region33
    $region32: #{ann_forward.1} parent=1 // pred_region
      _
    $region33: #{ann_forward.1} parent=1 // pred_fallthru
      _
    // Predicated region
    $region34: #{ann_forward.1} parent=1 // pred_check
      _
    $region35: #{ann_forward.1} parent=1 // pred_check_branch
      %32 = sbr.rel (0) target = $region37
    $region36: #{ann_forward.1} parent=1 // pred_region
      _
    $region37: #{ann_forward.1} parent=1 // pred_fallthru
      _
    %v33 = vld [vmem:[%s0] sm:$0xff]
    %v34 = vld [vmem:[%s1] sm:$0xff]
    %v35 = vld [vmem:[%s1 + $0x8] sm:$0xff]
    %v36 = vld [vmem:[%s1 + $0x10] sm:$0xff]
    %v37 = vld [vmem:[%s1 + $0x18] sm:$0xff]
    %v38 = vld [vmem:[%s1 + $0x20] sm:$0xff]
    %v39 = vld [vmem:[%s1 + $0x28] sm:$0xff]
    %v40 = vld [vmem:[%s1 + $0x30] sm:$0xff]
    %v41 = vld [vmem:[%s1 + $0x38] sm:$0xff]
    %v42 = vld [vmem:[%s1 + $0x40] sm:$0xff]
    %v43 = vld [vmem:[%s1 + $0x48] sm:$0xff]
    %v44 = vld [vmem:[%s1 + $0x50] sm:$0xff]
    %v45 = vld [vmem:[%s1 + $0x58] sm:$0xff]
    %v46 = vld [vmem:[%s1 + $0x60] sm:$0xff]
    %v47 = vld [vmem:[%s1 + $0x68] sm:$0xff]
    %v48 = vld [vmem:[%s1 + $0x70] sm:$0xff]
    %v49 = vld [vmem:[%s1 + $0x78] sm:$0xff]
    %v50 = vld [vmem:[%s2] sm:$0x1]
    %v52 = vlaneseq
    %v53 = vshrl.u32 %v52, 7
    %v54 = vsub.s32 0, %v53
    %v55 = vrot.slane %v50, %v54
    %57 = vmatprep.subr.mxu0 0.0
    %58 = vmatpush1.msra.mxu0 %v49
    %59 = vmatprep.subr.mxu0 0.0
    %60 = vmatpush1.msra.mxu0 %v48
    %61 = vmatprep.subr.mxu0 0.0
    %62 = vmatpush1.msra.mxu0 %v47
    %63 = vmatprep.subr.mxu0 0.0
    %64 = vmatpush1.msra.mxu0 %v46
    %65 = vmatprep.subr.mxu0 0.0
    %66 = vmatpush1.msra.mxu0 %v45
    %67 = vmatprep.subr.mxu0 0.0
    %68 = vmatpush1.msra.mxu0 %v44
    %69 = vmatprep.subr.mxu0 0.0
    %70 = vmatpush1.msra.mxu0 %v43
    %71 = vmatprep.subr.mxu0 0.0
    %72 = vmatpush1.msra.mxu0 %v42
    %73 = vmatprep.subr.mxu0 0.0
    %74 = vmatpush1.msra.mxu0 %v41
    %75 = vmatprep.subr.mxu0 0.0
    %76 = vmatpush1.msra.mxu0 %v40
    %77 = vmatprep.subr.mxu0 0.0
    %78 = vmatpush1.msra.mxu0 %v39
    %79 = vmatprep.subr.mxu0 0.0
    %80 = vmatpush1.msra.mxu0 %v38
    %81 = vmatprep.subr.mxu0 0.0
    %82 = vmatpush1.msra.mxu0 %v37
    %83 = vmatprep.subr.mxu0 0.0
    %84 = vmatpush1.msra.mxu0 %v36
    %85 = vmatprep.subr.mxu0 0.0
    %86 = vmatpush1.msra.mxu0 %v35
    %87 = vmatprep.subr.mxu0 0.0
    %88 = vmatpush1.msra.mxu0 %v34
    %89 = vmatprep.subr.mxu0 0.0
    %90 = vmatpush2.msra.mxu0 0.0
    %91 = vmatprep.subr.mxu0 0.0
    %92 = vmatpush2.msra.mxu0 0.0
    %93 = vmatprep.subr.mxu0 0.0
    %94 = vmatpush2.msra.mxu0 0.0
    %95 = vmatprep.subr.mxu0 0.0
    %96 = vmatpush2.msra.mxu0 0.0
    %97 = vmatprep.subr.mxu0 0.0
    %98 = vmatpush2.msra.mxu0 0.0
    %99 = vmatprep.subr.mxu0 0.0
    %100 = vmatpush2.msra.mxu0 0.0
    %101 = vmatprep.subr.mxu0 0.0
    %102 = vmatpush2.msra.mxu0 0.0
    %103 = vmatprep.subr.mxu0 0.0
    %104 = vmatpush2.msra.mxu0 0.0
    %105 = vmatprep.subr.mxu0 0.0
    %106 = vmatpush2.msra.mxu0 0.0
    %107 = vmatprep.subr.mxu0 0.0
    %108 = vmatpush2.msra.mxu0 0.0
    %109 = vmatprep.subr.mxu0 0.0
    %110 = vmatpush2.msra.mxu0 0.0
    %111 = vmatprep.subr.mxu0 0.0
    %112 = vmatpush2.msra.mxu0 0.0
    %113 = vmatprep.subr.mxu0 0.0
    %114 = vmatpush2.msra.mxu0 0.0
    %115 = vmatprep.subr.mxu0 0.0
    %116 = vmatpush2.msra.mxu0 0.0
    %117 = vmatprep.subr.mxu0 0.0
    %118 = vmatpush2.msra.mxu0 0.0
    %119 = vmatprep.subr.mxu0 0.0
    %120 = vmatpush2.msra.mxu0 0.0
    %121 = vmatprep.mubr.f32.mxu0 0.0
    %122 = vmatmul.mubr.f32.gmra.mxu0 %v33
    %v123 = vpop.f32.mrf.mxu0
    %v124 = vadd.f32 %v55, %v123
    %v125 = vpop.f32.mrf.mxu0
    %126 = vdwg.mxu0
    %v127 = vmul.f32 %v124, 0.01
    %v128 = vmax.f32 %v124, %v127
    %v129 = vld [vmem:[%s3] sm:$0xff]
    %v130 = vld [vmem:[%s3 + $0x8] sm:$0xff]
    %v131 = vld [vmem:[%s3 + $0x10] sm:$0xff]
    %v132 = vld [vmem:[%s3 + $0x18] sm:$0xff]
    %v133 = vld [vmem:[%s3 + $0x20] sm:$0xff]
    %v134 = vld [vmem:[%s3 + $0x28] sm:$0xff]
    %v135 = vld [vmem:[%s3 + $0x30] sm:$0xff]
    %v136 = vld [vmem:[%s3 + $0x38] sm:$0xff]
    %v137 = vld [vmem:[%s3 + $0x40] sm:$0xff]
    %v138 = vld [vmem:[%s3 + $0x48] sm:$0xff]
    %v139 = vld [vmem:[%s3 + $0x50] sm:$0xff]
    %v140 = vld [vmem:[%s3 + $0x58] sm:$0xff]
    %v141 = vld [vmem:[%s3 + $0x60] sm:$0xff]
    %v142 = vld [vmem:[%s3 + $0x68] sm:$0xff]
    %v143 = vld [vmem:[%s3 + $0x70] sm:$0xff]
    %v144 = vld [vmem:[%s3 + $0x78] sm:$0xff]
    %v145 = vld [vmem:[%s4] sm:$0x1]
    %v147 = vlaneseq
    %v148 = vshrl.u32 %v147, 7
    %v149 = vsub.s32 0, %v148
    %v150 = vrot.slane %v145, %v149
    %152 = vmatprep.subr.mxu0 0.0
    %153 = vmatpush1.msra.mxu0 %v144
    %154 = vmatprep.subr.mxu0 0.0
    %155 = vmatpush1.msra.mxu0 %v143
    %156 = vmatprep.subr.mxu0 0.0
    %157 = vmatpush1.msra.mxu0 %v142
    %158 = vmatprep.subr.mxu0 0.0
    %159 = vmatpush1.msra.mxu0 %v141
    %160 = vmatprep.subr.mxu0 0.0
    %161 = vmatpush1.msra.mxu0 %v140
    %162 = vmatprep.subr.mxu0 0.0
    %163 = vmatpush1.msra.mxu0 %v139
    %164 = vmatprep.subr.mxu0 0.0
    %165 = vmatpush1.msra.mxu0 %v138
    %166 = vmatprep.subr.mxu0 0.0
    %167 = vmatpush1.msra.mxu0 %v137
    %168 = vmatprep.subr.mxu0 0.0
    %169 = vmatpush1.msra.mxu0 %v136
    %170 = vmatprep.subr.mxu0 0.0
    %171 = vmatpush1.msra.mxu0 %v135
    %172 = vmatprep.subr.mxu0 0.0
    %173 = vmatpush1.msra.mxu0 %v134
    %174 = vmatprep.subr.mxu0 0.0
    %175 = vmatpush1.msra.mxu0 %v133
    %176 = vmatprep.subr.mxu0 0.0
    %177 = vmatpush1.msra.mxu0 %v132
    %178 = vmatprep.subr.mxu0 0.0
    %179 = vmatpush1.msra.mxu0 %v131
    %180 = vmatprep.subr.mxu0 0.0
    %181 = vmatpush1.msra.mxu0 %v130
    %182 = vmatprep.subr.mxu0 0.0
    %183 = vmatpush1.msra.mxu0 %v129
    %184 = vmatprep.subr.mxu0 0.0
    %185 = vmatpush2.msra.mxu0 0.0
    %186 = vmatprep.subr.mxu0 0.0
    %187 = vmatpush2.msra.mxu0 0.0
    %188 = vmatprep.subr.mxu0 0.0
    %189 = vmatpush2.msra.mxu0 0.0
    %190 = vmatprep.subr.mxu0 0.0
    %191 = vmatpush2.msra.mxu0 0.0
    %192 = vmatprep.subr.mxu0 0.0
    %193 = vmatpush2.msra.mxu0 0.0
    %194 = vmatprep.subr.mxu0 0.0
    %195 = vmatpush2.msra.mxu0 0.0
    %196 = vmatprep.subr.mxu0 0.0
    %197 = vmatpush2.msra.mxu0 0.0
    %198 = vmatprep.subr.mxu0 0.0
    %199 = vmatpush2.msra.mxu0 0.0
    %200 = vmatprep.subr.mxu0 0.0
    %201 = vmatpush2.msra.mxu0 0.0
    %202 = vmatprep.subr.mxu0 0.0
    %203 = vmatpush2.msra.mxu0 0.0
    %204 = vmatprep.subr.mxu0 0.0
    %205 = vmatpush2.msra.mxu0 0.0
    %206 = vmatprep.subr.mxu0 0.0
    %207 = vmatpush2.msra.mxu0 0.0
    %208 = vmatprep.subr.mxu0 0.0
    %209 = vmatpush2.msra.mxu0 0.0
    %210 = vmatprep.subr.mxu0 0.0
    %211 = vmatpush2.msra.mxu0 0.0
    %212 = vmatprep.subr.mxu0 0.0
    %213 = vmatpush2.msra.mxu0 0.0
    %214 = vmatprep.subr.mxu0 0.0
    %215 = vmatpush2.msra.mxu0 0.0
    %216 = vmatprep.mubr.f32.mxu0 0.0
    %217 = vmatmul.mubr.f32.gmra.mxu0 %v128
    %v218 = vpop.f32.mrf.mxu0
    %v219 = vadd.f32 %v150, %v218
    %v220 = vpop.f32.mrf.mxu0
    %221 = vdwg.mxu0
    %v222 = vmul.f32 %v219, 0.01
    %v223 = vmax.f32 %v219, %v222
    %v224 = vld [vmem:[%s5] sm:$0xff]
    %v225 = vld [vmem:[%s5 + $0x8] sm:$0xff]
    %v226 = vld [vmem:[%s5 + $0x10] sm:$0xff]
    %v227 = vld [vmem:[%s5 + $0x18] sm:$0xff]
    %v228 = vld [vmem:[%s5 + $0x20] sm:$0xff]
    %v229 = vld [vmem:[%s5 + $0x28] sm:$0xff]
    %v230 = vld [vmem:[%s5 + $0x30] sm:$0xff]
    %v231 = vld [vmem:[%s5 + $0x38] sm:$0xff]
    %v232 = vld [vmem:[%s5 + $0x40] sm:$0xff]
    %v233 = vld [vmem:[%s5 + $0x48] sm:$0xff]
    %v234 = vld [vmem:[%s5 + $0x50] sm:$0xff]
    %v235 = vld [vmem:[%s5 + $0x58] sm:$0xff]
    %v236 = vld [vmem:[%s5 + $0x60] sm:$0xff]
    %v237 = vld [vmem:[%s5 + $0x68] sm:$0xff]
    %v238 = vld [vmem:[%s5 + $0x70] sm:$0xff]
    %v239 = vld [vmem:[%s5 + $0x78] sm:$0xff]
    %v240 = vld [vmem:[%s6] sm:$0x1]
    %v242 = vlaneseq
    %v243 = vshrl.u32 %v242, 7
    %v244 = vsub.s32 0, %v243
    %v245 = vrot.slane %v240, %v244
    %247 = vmatprep.subr.mxu0 0.0
    %248 = vmatpush1.msra.mxu0 %v239
    %249 = vmatprep.subr.mxu0 0.0
    %250 = vmatpush1.msra.mxu0 %v238
    %251 = vmatprep.subr.mxu0 0.0
    %252 = vmatpush1.msra.mxu0 %v237
    %253 = vmatprep.subr.mxu0 0.0
    %254 = vmatpush1.msra.mxu0 %v236
    %255 = vmatprep.subr.mxu0 0.0
    %256 = vmatpush1.msra.mxu0 %v235
    %257 = vmatprep.subr.mxu0 0.0
    %258 = vmatpush1.msra.mxu0 %v234
    %259 = vmatprep.subr.mxu0 0.0
    %260 = vmatpush1.msra.mxu0 %v233
    %261 = vmatprep.subr.mxu0 0.0
    %262 = vmatpush1.msra.mxu0 %v232
    %263 = vmatprep.subr.mxu0 0.0
    %264 = vmatpush1.msra.mxu0 %v231
    %265 = vmatprep.subr.mxu0 0.0
    %266 = vmatpush1.msra.mxu0 %v230
    %267 = vmatprep.subr.mxu0 0.0
    %268 = vmatpush1.msra.mxu0 %v229
    %269 = vmatprep.subr.mxu0 0.0
    %270 = vmatpush1.msra.mxu0 %v228
    %271 = vmatprep.subr.mxu0 0.0
    %272 = vmatpush1.msra.mxu0 %v227
    %273 = vmatprep.subr.mxu0 0.0
    %274 = vmatpush1.msra.mxu0 %v226
    %275 = vmatprep.subr.mxu0 0.0
    %276 = vmatpush1.msra.mxu0 %v225
    %277 = vmatprep.subr.mxu0 0.0
    %278 = vmatpush1.msra.mxu0 %v224
    %279 = vmatprep.subr.mxu0 0.0
    %280 = vmatpush2.msra.mxu0 0.0
    %281 = vmatprep.subr.mxu0 0.0
    %282 = vmatpush2.msra.mxu0 0.0
    %283 = vmatprep.subr.mxu0 0.0
    %284 = vmatpush2.msra.mxu0 0.0
    %285 = vmatprep.subr.mxu0 0.0
    %286 = vmatpush2.msra.mxu0 0.0
    %287 = vmatprep.subr.mxu0 0.0
    %288 = vmatpush2.msra.mxu0 0.0
    %289 = vmatprep.subr.mxu0 0.0
    %290 = vmatpush2.msra.mxu0 0.0
    %291 = vmatprep.subr.mxu0 0.0
    %292 = vmatpush2.msra.mxu0 0.0
    %293 = vmatprep.subr.mxu0 0.0
    %294 = vmatpush2.msra.mxu0 0.0
    %295 = vmatprep.subr.mxu0 0.0
    %296 = vmatpush2.msra.mxu0 0.0
    %297 = vmatprep.subr.mxu0 0.0
    %298 = vmatpush2.msra.mxu0 0.0
    %299 = vmatprep.subr.mxu0 0.0
    %300 = vmatpush2.msra.mxu0 0.0
    %301 = vmatprep.subr.mxu0 0.0
    %302 = vmatpush2.msra.mxu0 0.0
    %303 = vmatprep.subr.mxu0 0.0
    %304 = vmatpush2.msra.mxu0 0.0
    %305 = vmatprep.subr.mxu0 0.0
    %306 = vmatpush2.msra.mxu0 0.0
    %307 = vmatprep.subr.mxu0 0.0
    %308 = vmatpush2.msra.mxu0 0.0
    %309 = vmatprep.subr.mxu0 0.0
    %310 = vmatpush2.msra.mxu0 0.0
    %311 = vmatprep.mubr.f32.mxu0 0.0
    %312 = vmatmul.mubr.f32.gmra.mxu0 %v223
    %v313 = vpop.f32.mrf.mxu0
    %v314 = vadd.f32 %v245, %v313
    %v315 = vpop.f32.mrf.mxu0
    %316 = vdwg.mxu0
    %v317 = vmul.f32 %v314, 0.01
    %v318 = vmax.f32 %v314, %v317
    %v319 = vld [vmem:[%s7] sm:$0xff]
    %v320 = vld [vmem:[%s7 + $0x8] sm:$0xff]
    %v321 = vld [vmem:[%s7 + $0x10] sm:$0xff]
    %v322 = vld [vmem:[%s7 + $0x18] sm:$0xff]
    %v323 = vld [vmem:[%s7 + $0x20] sm:$0xff]
    %v324 = vld [vmem:[%s7 + $0x28] sm:$0xff]
    %v325 = vld [vmem:[%s7 + $0x30] sm:$0xff]
    %v326 = vld [vmem:[%s7 + $0x38] sm:$0xff]
    %v327 = vld [vmem:[%s7 + $0x40] sm:$0xff]
    %v328 = vld [vmem:[%s7 + $0x48] sm:$0xff]
    %v329 = vld [vmem:[%s7 + $0x50] sm:$0xff]
    %v330 = vld [vmem:[%s7 + $0x58] sm:$0xff]
    %v331 = vld [vmem:[%s7 + $0x60] sm:$0xff]
    %v332 = vld [vmem:[%s7 + $0x68] sm:$0xff]
    %v333 = vld [vmem:[%s7 + $0x70] sm:$0xff]
    %v334 = vld [vmem:[%s7 + $0x78] sm:$0xff]
    %v335 = vld [vmem:[%s8] sm:$0x1]
    %v337 = vlaneseq
    %v338 = vshrl.u32 %v337, 7
    %v339 = vsub.s32 0, %v338
    %v340 = vrot.slane %v335, %v339
    %342 = vmatprep.subr.mxu0 0.0
    %343 = vmatpush1.msra.mxu0 %v334
    %344 = vmatprep.subr.mxu0 0.0
    %345 = vmatpush1.msra.mxu0 %v333
    %346 = vmatprep.subr.mxu0 0.0
    %347 = vmatpush1.msra.mxu0 %v332
    %348 = vmatprep.subr.mxu0 0.0
    %349 = vmatpush1.msra.mxu0 %v331
    %350 = vmatprep.subr.mxu0 0.0
    %351 = vmatpush1.msra.mxu0 %v330
    %352 = vmatprep.subr.mxu0 0.0
    %353 = vmatpush1.msra.mxu0 %v329
    %354 = vmatprep.subr.mxu0 0.0
    %355 = vmatpush1.msra.mxu0 %v328
    %356 = vmatprep.subr.mxu0 0.0
    %357 = vmatpush1.msra.mxu0 %v327
    %358 = vmatprep.subr.mxu0 0.0
    %359 = vmatpush1.msra.mxu0 %v326
    %360 = vmatprep.subr.mxu0 0.0
    %361 = vmatpush1.msra.mxu0 %v325
    %362 = vmatprep.subr.mxu0 0.0
    %363 = vmatpush1.msra.mxu0 %v324
    %364 = vmatprep.subr.mxu0 0.0
    %365 = vmatpush1.msra.mxu0 %v323
    %366 = vmatprep.subr.mxu0 0.0
    %367 = vmatpush1.msra.mxu0 %v322
    %368 = vmatprep.subr.mxu0 0.0
    %369 = vmatpush1.msra.mxu0 %v321
    %370 = vmatprep.subr.mxu0 0.0
    %371 = vmatpush1.msra.mxu0 %v320
    %372 = vmatprep.subr.mxu0 0.0
    %373 = vmatpush1.msra.mxu0 %v319
    %374 = vmatprep.subr.mxu0 0.0
    %375 = vmatpush2.msra.mxu0 0.0
    %376 = vmatprep.subr.mxu0 0.0
    %377 = vmatpush2.msra.mxu0 0.0
    %378 = vmatprep.subr.mxu0 0.0
    %379 = vmatpush2.msra.mxu0 0.0
    %380 = vmatprep.subr.mxu0 0.0
    %381 = vmatpush2.msra.mxu0 0.0
    %382 = vmatprep.subr.mxu0 0.0
    %383 = vmatpush2.msra.mxu0 0.0
    %384 = vmatprep.subr.mxu0 0.0
    %385 = vmatpush2.msra.mxu0 0.0
    %386 = vmatprep.subr.mxu0 0.0
    %387 = vmatpush2.msra.mxu0 0.0
    %388 = vmatprep.subr.mxu0 0.0
    %389 = vmatpush2.msra.mxu0 0.0
    %390 = vmatprep.subr.mxu0 0.0
    %391 = vmatpush2.msra.mxu0 0.0
    %392 = vmatprep.subr.mxu0 0.0
    %393 = vmatpush2.msra.mxu0 0.0
    %394 = vmatprep.subr.mxu0 0.0
    %395 = vmatpush2.msra.mxu0 0.0
    %396 = vmatprep.subr.mxu0 0.0
    %397 = vmatpush2.msra.mxu0 0.0
    %398 = vmatprep.subr.mxu0 0.0
    %399 = vmatpush2.msra.mxu0 0.0
    %400 = vmatprep.subr.mxu0 0.0
    %401 = vmatpush2.msra.mxu0 0.0
    %402 = vmatprep.subr.mxu0 0.0
    %403 = vmatpush2.msra.mxu0 0.0
    %404 = vmatprep.subr.mxu0 0.0
    %405 = vmatpush2.msra.mxu0 0.0
    %406 = vmatprep.mubr.f32.mxu0 0.0
    %407 = vmatmul.mubr.f32.gmra.mxu0 %v318
    %v408 = vpop.f32.mrf.mxu0
    %v409 = vadd.f32 %v340, %v408
    %v410 = vpop.f32.mrf.mxu0
    %411 = vdwg.mxu0
    %412 = vst [vmem:[#allocation2] sm:$0xff] %v409
    // Predicated region
    $region38: #{ann_forward.1} parent=1 // pred_check
      _
    $region39: #{ann_forward.1} parent=1 // pred_check_branch
      %414 = sbr.rel (0) target = $region41
    $region40: #{ann_forward.1} parent=1 // pred_region
      %s416 = ssub.s32 128, 128
      %417 = vsyncadd [#allocation3], %s416
      %s419 = sshll.u32 [#allocation2], 4
      %s420 = int_to_ptr.vmem [resolvable:$true] %s419
      %422 = dma.vmem_to_hbm [thread:$0]  %s420, 128, %s9, [#allocation3]
    $region41: #{ann_forward.1} parent=1 // pred_fallthru
      _
    // Predicated region
    $region42: #{ann_forward.1} parent=1 // pred_check
      _
    $region43: #{ann_forward.1} parent=1 // pred_check_branch
      %424 = sbr.rel (0) target = $region45
    $region44: #{ann_forward.1} parent=1 // pred_region
      %425 = dma.done [#allocation3], 128
    $region45: #{ann_forward.1} parent=1 // pred_fallthru
      _
    %426 = vsyncpa [#allocation3], 1

</llo_original>
